<compile_context>
chip_gen: v6e
topology: v6e:2x2x1
jax: 0.10.0
libtpu: 0.0.40
codegen_flags: <defaults>
</compile_context>

<pallas_src>
import functools

import jax
import jax.numpy as jnp
from jax.experimental import pallas as pl
from jax.experimental.pallas import tpu as pltpu

_LANE = 128
_SUB = 8


def _kl_kernel(x_ref, y_ref, out_ref, *, inv_t):
    # x_ref / y_ref : (1, C, TILE_S, 128)  student / teacher logits
    # out_ref       : (1, 1, 8, 128)       lane/sublane-dense partial KL sums
    x = x_ref[0].astype(jnp.float32)
    y = y_ref[0].astype(jnp.float32)
    if inv_t != 1.0:  # trace-time branch: skipped entirely for T == 1
        x = x * inv_t
        y = y * inv_t

    # Channel axis is axis 0 (leading, non-vreg) -> cross-slab VPU reductions.
    x_sh = x - jnp.max(x, axis=0, keepdims=True)
    y_sh = y - jnp.max(y, axis=0, keepdims=True)
    ex = jnp.exp(x_sh)
    ey = jnp.exp(y_sh)
    zx = jnp.sum(ex, axis=0, keepdims=True)          # (1, TILE_S, 128)
    zy = jnp.sum(ey, axis=0, keepdims=True)          # (1, TILE_S, 128)

    inv_zy = 1.0 / zy                                 # HW recips, not C*HW divides
    q = ey * inv_zy                                   # softmax(teacher)

    # log q - log p = (y_sh - log zy) - (x_sh - log zx) = (y_sh - x_sh) + log(zx/zy)
    diff = (y_sh - x_sh) + jnp.log(zx * inv_zy)
    kl = jnp.where(q > 0.0, q * diff, 0.0)            # matches F.kl_div zeroing at target==0

    tile_s = kl.shape[1]
    red = jnp.sum(kl, axis=0)                         # (TILE_S, 128)   VPU over channels
    red = red.reshape(tile_s // _SUB, _SUB, _LANE)    # group sublane tiles (layout no-op)
    out_ref[0, 0] = jnp.sum(red, axis=0)              # (8, 128): no cross-sublane (XLU) reduce


def _choose_tile(C, n_sub, per_block_bytes=2 * 1024 * 1024):
    """Pick a sublane-group tile (multiple of 8) so one f32 input block ~<= 2 MiB.

    Returns (tile_s, n_sub_pad).  Prefers a divisor of the (8-rounded) spatial
    group count to avoid an extra HBM pad copy; otherwise accepts padding.
    Conservative across generations (fits v7x's 64 MiB VMEM with headroom).
    """
    n_sub8 = ((n_sub + _SUB - 1) // _SUB) * _SUB
    budget = max(_SUB, (per_block_bytes // (C * _LANE * 4) // _SUB) * _SUB)
    if n_sub8 <= budget:
        return n_sub8, n_sub8
    tile = budget
    t = budget
    while t >= _SUB:
        if n_sub8 % t == 0:
            tile = t
            break
        t -= _SUB
    if tile < max(_SUB, budget // 4):  # divisor too small -> pad instead
        tile = budget
    n_sub_pad = ((n_sub8 + tile - 1) // tile) * tile
    return tile, n_sub_pad


def kl_loss(input_logits, target_logits, mask=None, softmax_t=1.0):
    """Pallas TPU forward of the PyTorch kl_loss module."""
    assert input_logits.shape == target_logits.shape
    B, C = input_logits.shape[0], input_logits.shape[1]
    spatial = 1
    for d in input_logits.shape[2:]:
        spatial *= d

    # ---- relayout: (B, C, spatial) -> (B, C, n_sub_pad, 128), zero padded ----
    # Padded spatial positions have identical (zero) student/teacher logits, so
    # their KL contribution is exactly 0 (p == q): no masking needed.
    n_sub = pl.cdiv(spatial, _LANE)
    tile_s, n_sub_pad = _choose_tile(C, n_sub)
    n_tiles = n_sub_pad // tile_s
    hw_pad = n_sub_pad * _LANE

    x = input_logits.reshape(B, C, spatial)
    y = target_logits.reshape(B, C, spatial)
    if hw_pad != spatial:
        pad = hw_pad - spatial
        x = jnp.pad(x, ((0, 0), (0, 0), (0, pad)))
        y = jnp.pad(y, ((0, 0), (0, 0), (0, pad)))
    # Keep the input dtype (e.g. bf16) through the DMA; cast inside the kernel.
    x = x.reshape(B, C, n_sub_pad, _LANE)
    y = y.reshape(B, C, n_sub_pad, _LANE)

    kernel = functools.partial(_kl_kernel, inv_t=1.0 / float(softmax_t))

    partials = pl.pallas_call(
        kernel,
        out_shape=jax.ShapeDtypeStruct((B, n_tiles, _SUB, _LANE), jnp.float32),
        grid_spec=pltpu.PrefetchScalarGridSpec(
            num_scalar_prefetch=0,
            grid=(B, n_tiles),
            in_specs=[
                pl.BlockSpec((1, C, tile_s, _LANE), lambda b, s: (b, 0, s, 0)),
                pl.BlockSpec((1, C, tile_s, _LANE), lambda b, s: (b, 0, s, 0)),
            ],
            # One (8,128)-aligned partial block per grid step; no revisits, so
            # both grid axes stay 'parallel' (megacore sharding on v7x).
            out_specs=pl.BlockSpec((1, 1, _SUB, _LANE), lambda b, s: (b, s, 0, 0)),
        ),
        compiler_params=pltpu.CompilerParams(
            dimension_semantics=("parallel", "parallel"),
            vmem_limit_bytes=48 * 1024 * 1024,
        ),
    )(x, y)

    # Reduce the tiny partial-sum tensor in the wrapper (XLA handles it fine).
    per_batch_sum = jnp.sum(partials.reshape(B, -1), axis=1)

    if mask is None:
        # F.kl_div(..., reduction='batchmean'): total sum / batch size
        return jnp.sum(per_batch_sum) / B
    else:
        # reduction='none' -> .mean((1, 2, 3)) -> * mask -> .mean()
        per_batch_mean = per_batch_sum / (C * spatial)
        return jnp.mean(per_batch_mean * jnp.asarray(mask, jnp.float32))


def _kl_loss_ref(input_logits, target_logits, mask=None, softmax_t=1.0):
    """Pure-JAX reference mirroring the PyTorch semantics (for verification)."""
    T = softmax_t
    logp = jax.nn.log_softmax(input_logits / T, axis=1)
    q = jax.nn.softmax(target_logits / T, axis=1)
    logq = jax.nn.log_softmax(target_logits / T, axis=1)
    kl = jnp.where(q > 0.0, q * (logq - logp), 0.0)
    if mask is None:
        return jnp.sum(kl) / input_logits.shape[0]
    per_batch_mean = jnp.mean(kl, axis=tuple(range(1, kl.ndim)))
    return jnp.mean(per_batch_mean * mask)


if __name__ == "__main__":
    key = jax.random.PRNGKey(0)
    k1, k2, k3 = jax.random.split(key, 3)

    B, C, H, W = 2, 4, 16, 16
    student = jax.random.normal(k1, (B, C, H, W), dtype=jnp.float32)
    teacher = jax.random.normal(k2, (B, C, H, W), dtype=jnp.float32)
    mask = jax.random.uniform(k3, (B,), dtype=jnp.float32)

    # mask=None path (reduction='batchmean'), T = 1
    loss = jax.block_until_ready(kl_loss(student, teacher, softmax_t=1.0))
    ref = _kl_loss_ref(student, teacher, softmax_t=1.0)
    assert jnp.allclose(loss, ref, rtol=1e-4, atol=1e-5), (loss, ref)

    # masked path with temperature != 1 (exercises the inv_t scaling branch)
    loss_m = jax.block_until_ready(kl_loss(student, teacher, mask=mask, softmax_t=2.0))
    ref_m = _kl_loss_ref(student, teacher, mask=mask, softmax_t=2.0)
    assert jnp.allclose(loss_m, ref_m, rtol=1e-4, atol=1e-5), (loss_m, ref_m)

    # spatial size not a multiple of 128 exercises the zero-padding path
    k4, k5 = jax.random.split(k3)
    s2 = jax.random.normal(k4, (2, 3, 5, 7), dtype=jnp.float32)
    t2 = jax.random.normal(k5, (2, 3, 5, 7), dtype=jnp.float32)
    loss2 = jax.block_until_ready(kl_loss(s2, t2, softmax_t=1.0))
    ref2 = _kl_loss_ref(s2, t2, softmax_t=1.0)
    assert jnp.allclose(loss2, ref2, rtol=1e-4, atol=1e-5), (loss2, ref2)

    print("KERNEL_OK")
</pallas_src>

<mosaic_0001>
module attributes {stable_mosaic.version = 11 : i64} {
  func.func @_kl_kernel(%arg0: i32, %arg1: i32, %arg2: memref<1x4x8x128xf32, #tpu.memory_space<vmem>>, %arg3: memref<1x4x8x128xf32, #tpu.memory_space<vmem>>, %arg4: memref<1x1x8x128xf32, #tpu.memory_space<vmem>>) attributes {dimension_semantics = [#tpu.dimension_semantics<parallel>, #tpu.dimension_semantics<parallel>], iteration_bounds = array<i64: 2, 1>, scalar_prefetch = 0 : i64, scratch_operands = 0 : i64, tpu.core_type = #tpu.core_type<tc>, window_params = [{transform_indices = @transform_0, window_bounds = array<i64: 1, 4, 8, 128>}, {transform_indices = @transform_1, window_bounds = array<i64: 1, 4, 8, 128>}, {transform_indices = @transform_2, window_bounds = array<i64: 1, 1, 8, 128>}]} {
    %c0 = arith.constant 0 : index
    %c0_0 = arith.constant 0 : index
    %c0_1 = arith.constant 0 : index
    %c0_2 = arith.constant 0 : index
    %0 = vector.load %arg2[%c0, %c0_0, %c0_1, %c0_2] : memref<1x4x8x128xf32, #tpu.memory_space<vmem>>, vector<1x4x8x128xf32>
    %1 = vector.shape_cast %0 : vector<1x4x8x128xf32> to vector<4x8x128xf32>
    %c0_3 = arith.constant 0 : index
    %c0_4 = arith.constant 0 : index
    %c0_5 = arith.constant 0 : index
    %c0_6 = arith.constant 0 : index
    %2 = vector.load %arg3[%c0_3, %c0_4, %c0_5, %c0_6] : memref<1x4x8x128xf32, #tpu.memory_space<vmem>>, vector<1x4x8x128xf32>
    %3 = vector.shape_cast %2 : vector<1x4x8x128xf32> to vector<4x8x128xf32>
    %cst = arith.constant dense<0xFF800000> : vector<8x128xf32>
    %4 = vector.multi_reduction <maximumf>, %1, %cst [0] : vector<4x8x128xf32> to vector<8x128xf32>
    %5 = vector.shape_cast %4 : vector<8x128xf32> to vector<1x8x128xf32>
    %6 = vector.broadcast %5 : vector<1x8x128xf32> to vector<4x8x128xf32>
    %7 = arith.subf %1, %6 : vector<4x8x128xf32>
    %cst_7 = arith.constant dense<0xFF800000> : vector<8x128xf32>
    %8 = vector.multi_reduction <maximumf>, %3, %cst_7 [0] : vector<4x8x128xf32> to vector<8x128xf32>
    %9 = vector.shape_cast %8 : vector<8x128xf32> to vector<1x8x128xf32>
    %10 = vector.broadcast %9 : vector<1x8x128xf32> to vector<4x8x128xf32>
    %11 = arith.subf %3, %10 : vector<4x8x128xf32>
    %12 = math.exp %7 : vector<4x8x128xf32>
    %13 = math.exp %11 : vector<4x8x128xf32>
    %cst_8 = arith.constant dense<0.000000e+00> : vector<8x128xf32>
    %14 = vector.multi_reduction <add>, %12, %cst_8 [0] : vector<4x8x128xf32> to vector<8x128xf32>
    %15 = vector.shape_cast %14 : vector<8x128xf32> to vector<1x8x128xf32>
    %cst_9 = arith.constant dense<0.000000e+00> : vector<8x128xf32>
    %16 = vector.multi_reduction <add>, %13, %cst_9 [0] : vector<4x8x128xf32> to vector<8x128xf32>
    %17 = vector.shape_cast %16 : vector<8x128xf32> to vector<1x8x128xf32>
    %cst_10 = arith.constant 1.000000e+00 : f32
    %18 = vector.broadcast %cst_10 : f32 to vector<1x8x128xf32>
    %19 = arith.divf %18, %17 : vector<1x8x128xf32>
    %20 = vector.broadcast %19 : vector<1x8x128xf32> to vector<4x8x128xf32>
    %21 = arith.mulf %13, %20 : vector<4x8x128xf32>
    %22 = arith.subf %11, %7 : vector<4x8x128xf32>
    %23 = arith.mulf %15, %19 : vector<1x8x128xf32>
    %24 = math.log %23 : vector<1x8x128xf32>
    %25 = vector.broadcast %24 : vector<1x8x128xf32> to vector<4x8x128xf32>
    %26 = arith.addf %22, %25 : vector<4x8x128xf32>
    %cst_11 = arith.constant 0.000000e+00 : f32
    %27 = vector.broadcast %cst_11 : f32 to vector<4x8x128xf32>
    %28 = arith.cmpf ogt, %21, %27 : vector<4x8x128xf32>
    %29 = arith.mulf %21, %26 : vector<4x8x128xf32>
    %cst_12 = arith.constant 0.000000e+00 : f32
    %30 = vector.broadcast %cst_12 : f32 to vector<4x8x128xf32>
    %31 = arith.select %28, %29, %30 : vector<4x8x128xi1>, vector<4x8x128xf32>
    %cst_13 = arith.constant dense<0.000000e+00> : vector<8x128xf32>
    %32 = vector.multi_reduction <add>, %31, %cst_13 [0] : vector<4x8x128xf32> to vector<8x128xf32>
    %33 = vector.shape_cast %32 : vector<8x128xf32> to vector<1x8x128xf32>
    %cst_14 = arith.constant dense<0.000000e+00> : vector<8x128xf32>
    %34 = vector.multi_reduction <add>, %33, %cst_14 [0] : vector<1x8x128xf32> to vector<8x128xf32>
    %c0_15 = arith.constant 0 : index
    %c0_16 = arith.constant 0 : index
    %c0_17 = arith.constant 0 : index
    %c0_18 = arith.constant 0 : index
    %35 = vector.load %arg4[%c0_15, %c0_16, %c0_17, %c0_18] : memref<1x1x8x128xf32, #tpu.memory_space<vmem>>, vector<1x1x8x128xf32>
    %36 = vector.shape_cast %35 : vector<1x1x8x128xf32> to vector<8x128xf32>
    %37 = vector.shape_cast %34 : vector<8x128xf32> to vector<1x1x8x128xf32>
    tpu.vector_store %arg4[%c0_15, %c0_16, %c0_17, %c0_18], %37 {strides = array<i32>} : memref<1x1x8x128xf32, #tpu.memory_space<vmem>>, vector<1x1x8x128xf32>,
    return
  }
  func.func @transform_0(%arg0: i32, %arg1: i32) -> (i32, i32, i32, i32) {
    %c0_i32 = arith.constant 0 : i32
    %c0_i32_0 = arith.constant 0 : i32
    %c0_i32_1 = arith.constant 0 : i32
    return %arg0, %c0_i32, %arg1, %c0_i32_0 : i32, i32, i32, i32
  }
  func.func @transform_1(%arg0: i32, %arg1: i32) -> (i32, i32, i32, i32) {
    %c0_i32 = arith.constant 0 : i32
    %c0_i32_0 = arith.constant 0 : i32
    %c0_i32_1 = arith.constant 0 : i32
    return %arg0, %c0_i32, %arg1, %c0_i32_0 : i32, i32, i32, i32
  }
  func.func @transform_2(%arg0: i32, %arg1: i32) -> (i32, i32, i32, i32) {
    %c0_i32 = arith.constant 0 : i32
    %c0_i32_0 = arith.constant 0 : i32
    %c0_i32_1 = arith.constant 0 : i32
    return %arg0, %arg1, %c0_i32, %c0_i32_0 : i32, i32, i32, i32
  }
}

</mosaic_0001>

<llo_original>
// kernel: tpu_custom_call.1
$region0: #{tpu_custom_call.1}
  #allocation0 [shape = 'u32[]', space=smem, size = 0x4, offset = 0x4, fixed_abs, tag = 'smem constant byte address 0x4 - core index']
  #allocation1 [shape = 'u32[144,128]{1,0:T(1,128)}', space=vmem, size = 0x12000, scoped, tag = 'internal scratch']
  %s0 = inlined_call_operand.hbm [shape: f32[2,4,8,128], index: 0, kind: input, shape index: {}]
  %s1 = inlined_call_operand.hbm [shape: f32[2,4,8,128], index: 1, kind: input, shape index: {}]
  %s2 = inlined_call_operand.hbm [shape: f32[2,1,8,128], index: 2, kind: output, shape index: {}]
  %s3 = sld [smem:[#allocation0]]
  $region49: #{tpu_custom_call.1} parent=0
    _
  %s5 = ssub.s32 1, %s3
  %s6 = scalar_select 0, %s5, %s3
  $region1: #{tpu_custom_call.1} parent=0
    #allocation2 [shape = 'u8[32768]{0}', space=vmem, size = 0x8000, scoped, tag = 'input window, operand 0']
    #allocation3 [shape = 's32[2]{0}', space=sflag, size = 0x8, scoped, tag = 'scoped memory for tpu_custom_call.1']
    #allocation4 [shape = 's32[2]{0}', space=sflag, size = 0x8, scoped, tag = 'scoped memory for tpu_custom_call.1']
    #allocation5 [shape = 'u8[32768]{0}', space=vmem, size = 0x8000, scoped, tag = 'input window, operand 1']
    #allocation6 [shape = 's32[2]{0}', space=sflag, size = 0x8, scoped, tag = 'scoped memory for tpu_custom_call.1']
    #allocation7 [shape = 'u8[8192]{0}', space=vmem, size = 0x2000, scoped, tag = 'output window, operand 0']
    %7 = vsyncpa [#allocation3], 0
    %s8 = scalar_lea.sflag [#allocation3], 1
    %9 = vsyncpa %s8, 0
    %10 = vsyncpa [#allocation6], 0
    %s11 = scalar_lea.sflag [#allocation6], 1
    %12 = vsyncpa %s11, 0
    %13 = vsyncpa [#allocation4], 0
    %s14 = scalar_lea.sflag [#allocation4], 1
    %15 = vsyncpa %s14, 0
    loop: start=0, step=1, limit=4
    $region2: #{tpu_custom_call.1} parent=1 // loop_pre_header
      _
    $region3: #{tpu_custom_call.1} parent=1 // loop_header
      %s17 = sphi 0, %s21
      %p18 = scmp.ge.s32.totalorder %s17, 4
      %s24 = sphi 0, %s36
      %s25 = sphi 0, %s32
      %s26 = sphi 0, %s24
      %s27 = sphi 0, %s25
      %s28 = sphi 0, %s26
      %s29 = sphi 0, %s27
      %s41 = sphi 0, %s43
      %s44 = sphi 0, %s41
      %s45 = sphi 0, %s44
      %s61 = sphi 0, %s45
      %s69 = sphi 0, %s71
      %s72 = sphi 0, %s69
      %s73 = sphi 0, %s72
      %s89 = sphi 0, %s73
      %s97 = sphi 0, %s99
      %s100 = sphi 0, %s97
      %s101 = sphi 0, %s100
      %s117 = sphi 0, %s101
    $region4: #{tpu_custom_call.1} parent=1 // loop_header_branch
      %20 = sbr.rel (%p18) target = $region8
    $region5: #{tpu_custom_call.1} parent=1 // loop_body
      %s22 = ssub.s32 %s17, 1
      %s23 = ssub.s32 %s17, 2
      %s30 = sadd.s32 1, %s25
      %p31 = scmp.ge.s32.totalorder %s30, 1
      %s32 = scalar_select %p31, 0, %s30
      %s33 = sadd.s32 1, %s24
      %s34 = scalar_select %p31, %s33, %s24
      %p35 = scmp.ge.s32.totalorder %s34, 2
      %s36 = scalar_select %p35, 0, %s34
      %s37 = ssub.s32 %s24, %s36
      %s38 = ssub.s32 %s25, %s32
      %s39 = sor.u32 %s37, %s38
      %p40 = scmp.eq.s32.totalorder %s39, 0
      %s42 = sadd.s32 %s41, 1
      %s43 = scalar_select %p40, %s41, %s42
      %p46 = pneg %p40
      %p47 = scmp.eq.s32.totalorder %s17, 1
      %p48 = por %p46, %p47
      %p49 = scmp.ne.s32.totalorder %s41, %s44
      %p50 = scmp.eq.s32.totalorder %s17, 0
      %p51 = por %p49, %p50
      %p52 = scmp.ne.s32.totalorder %s41, %s44
      %p53 = scmp.eq.s32.totalorder %s22, 1
      %p54 = por %p52, %p53
      %p55 = scmp.ne.s32.totalorder %s44, %s45
      %p56 = scmp.eq.s32.totalorder %s22, 0
      %p57 = por %p55, %p56
      %p58 = scmp.ne.s32.totalorder %s44, %s45
      %p59 = scmp.eq.s32.totalorder %s23, 1
      %p60 = por %p58, %p59
      %p62 = scmp.ne.s32.totalorder %s45, %s61
      %p63 = scmp.eq.s32.totalorder %s23, 0
      %p64 = por %p62, %p63
      %s65 = ssub.s32 %s24, %s36
      %s66 = ssub.s32 %s25, %s32
      %s67 = sor.u32 %s65, %s66
      %p68 = scmp.eq.s32.totalorder %s67, 0
      %s70 = sadd.s32 %s69, 1
      %s71 = scalar_select %p68, %s69, %s70
      %p74 = pneg %p68
      %p75 = scmp.eq.s32.totalorder %s17, 1
      %p76 = por %p74, %p75
      %p77 = scmp.ne.s32.totalorder %s69, %s72
      %p78 = scmp.eq.s32.totalorder %s17, 0
      %p79 = por %p77, %p78
      %p80 = scmp.ne.s32.totalorder %s69, %s72
      %p81 = scmp.eq.s32.totalorder %s22, 1
      %p82 = por %p80, %p81
      %p83 = scmp.ne.s32.totalorder %s72, %s73
      %p84 = scmp.eq.s32.totalorder %s22, 0
      %p85 = por %p83, %p84
      %p86 = scmp.ne.s32.totalorder %s72, %s73
      %p87 = scmp.eq.s32.totalorder %s23, 1
      %p88 = por %p86, %p87
      %p90 = scmp.ne.s32.totalorder %s73, %s89
      %p91 = scmp.eq.s32.totalorder %s23, 0
      %p92 = por %p90, %p91
      %s93 = ssub.s32 %s24, %s36
      %s94 = ssub.s32 %s25, %s32
      %s95 = sor.u32 %s93, %s94
      %p96 = scmp.eq.s32.totalorder %s95, 0
      %s98 = sadd.s32 %s97, 1
      %s99 = scalar_select %p96, %s97, %s98
      %p102 = pneg %p96
      %p103 = scmp.eq.s32.totalorder %s17, 1
      %p104 = por %p102, %p103
      %p105 = scmp.ne.s32.totalorder %s97, %s100
      %p106 = scmp.eq.s32.totalorder %s17, 0
      %p107 = por %p105, %p106
      %p108 = scmp.ne.s32.totalorder %s97, %s100
      %p109 = scmp.eq.s32.totalorder %s22, 1
      %p110 = por %p108, %p109
      %p111 = scmp.ne.s32.totalorder %s100, %s101
      %p112 = scmp.eq.s32.totalorder %s22, 0
      %p113 = por %p111, %p112
      %p114 = scmp.ne.s32.totalorder %s100, %s101
      %p115 = scmp.eq.s32.totalorder %s23, 1
      %p116 = por %p114, %p115
      %p118 = scmp.ne.s32.totalorder %s101, %s117
      %p119 = scmp.eq.s32.totalorder %s23, 0
      %p120 = por %p118, %p119
      %p121 = scmp.le.s32.totalorder 1, %s17
      %p122 = scmp.lt.s32.totalorder %s17, 3
      %p123 = pnand %p121, %p122
      %p124 = pneg %p123
      // Predicated region
      $region9: #{tpu_custom_call.1} parent=5 // pred_check
        _
      $region10: #{tpu_custom_call.1} parent=5 // pred_check_branch
        %126 = sbr.rel (%p123) target = $region12
      $region11: #{tpu_custom_call.1} parent=5 // pred_region
        %s127 = ssub.s32 %s17, 1
      $region12: #{tpu_custom_call.1} parent=5 // pred_fallthru
        _
      %p128 = scmp.lt.s32.totalorder %s17, 2
      // Predicated region
      $region13: #{tpu_custom_call.1} parent=5 // pred_check
        %p129 = pneg %p128
      $region14: #{tpu_custom_call.1} parent=5 // pred_check_branch
        %131 = sbr.rel (%p129) target = $region16
      $region15: #{tpu_custom_call.1} parent=5 // pred_region
        // Predicated region
        $region17: #{tpu_custom_call.1} parent=15 // pred_check
          %p132 = pneg %p51
        $region18: #{tpu_custom_call.1} parent=15 // pred_check_branch
          %134 = sbr.rel (%p132) target = $region20
        $region19: #{tpu_custom_call.1} parent=15 // pred_region
          %s135 = sand.u32 %s41, 1
          %s136 = scalar_lea.sflag [#allocation3], %s135
          %s137 = sand.u32 %s41, 1
          %s138 = smul.addr %s137, 32
          %s139 = scalar_lea.vmem [#allocation2], %s138
          %s141 = ssub.s32 512, 512
          %142 = vsyncadd %s136, %s141
          %s143 = smul.addr %s24, 4
          %s144 = sadd.s32 %s25, %s143
          %s145 = smul.addr %s144, 128
          %s146 = scalar_lea.hbm %s0, %s145
          %s147 = sshll.u32 %s139, 4
          %s148 = int_to_ptr.vmem [resolvable:$true] %s147
          %153 = dma.hbm_to_vmem [thread:$0]  %s146, 512, %s148, %s136, 128, 128, 8
        $region20: #{tpu_custom_call.1} parent=15 // pred_fallthru
          _
        // Predicated region
        $region21: #{tpu_custom_call.1} parent=15 // pred_check
          %p154 = pneg %p79
        $region22: #{tpu_custom_call.1} parent=15 // pred_check_branch
          %156 = sbr.rel (%p154) target = $region24
        $region23: #{tpu_custom_call.1} parent=15 // pred_region
          %s157 = sand.u32 %s69, 1
          %s158 = scalar_lea.sflag [#allocation6], %s157
          %s159 = sand.u32 %s69, 1
          %s160 = smul.addr %s159, 32
          %s161 = scalar_lea.vmem [#allocation5], %s160
          %s163 = ssub.s32 512, 512
          %164 = vsyncadd %s158, %s163
          %s165 = smul.addr %s24, 4
          %s166 = sadd.s32 %s25, %s165
          %s167 = smul.addr %s166, 128
          %s168 = scalar_lea.hbm %s1, %s167
          %s169 = sshll.u32 %s161, 4
          %s170 = int_to_ptr.vmem [resolvable:$true] %s169
          %175 = dma.hbm_to_vmem [thread:$0]  %s168, 512, %s170, %s158, 128, 128, 8
        $region24: #{tpu_custom_call.1} parent=15 // pred_fallthru
          _
      $region16: #{tpu_custom_call.1} parent=5 // pred_fallthru
        _
      %p176 = scmp.le.s32.totalorder 1, %s17
      %p177 = scmp.lt.s32.totalorder %s17, 3
      %p178 = pnand %p176, %p177
      %p179 = pneg %p178
      // Predicated region
      $region25: #{tpu_custom_call.1} parent=5 // pred_check
        _
      $region26: #{tpu_custom_call.1} parent=5 // pred_check_branch
        %181 = sbr.rel (%p178) target = $region28
      $region27: #{tpu_custom_call.1} parent=5 // pred_region
        %s182 = ssub.s32 %s17, 1
        %s183 = sand.u32 %s44, 1
        %s184 = scalar_lea.sflag [#allocation3], %s183
        %s185 = sand.u32 %s44, 1
        %s186 = smul.addr %s185, 32
        %s187 = scalar_lea.vmem [#allocation2], %s186
        // Predicated region
        $region29: #{tpu_custom_call.1} parent=27 // pred_check
          %p188 = pneg %p57
        $region30: #{tpu_custom_call.1} parent=27 // pred_check_branch
          %190 = sbr.rel (%p188) target = $region32
        $region31: #{tpu_custom_call.1} parent=27 // pred_region
          %191 = dma.done %s184, 512
        $region32: #{tpu_custom_call.1} parent=27 // pred_fallthru
          _
        %s192 = sand.u32 %s72, 1
        %s193 = scalar_lea.sflag [#allocation6], %s192
        %s194 = sand.u32 %s72, 1
        %s195 = smul.addr %s194, 32
        %s196 = scalar_lea.vmem [#allocation5], %s195
        // Predicated region
        $region33: #{tpu_custom_call.1} parent=27 // pred_check
          %p197 = pneg %p85
        $region34: #{tpu_custom_call.1} parent=27 // pred_check_branch
          %199 = sbr.rel (%p197) target = $region36
        $region35: #{tpu_custom_call.1} parent=27 // pred_region
          %200 = dma.done %s193, 512
        $region36: #{tpu_custom_call.1} parent=27 // pred_fallthru
          _
        %s201 = sand.u32 %s44, 1
        %s202 = scalar_lea.sflag [#allocation3], %s201
        %s203 = sand.u32 %s44, 1
        %s204 = smul.addr %s203, 32
        %s205 = scalar_lea.vmem [#allocation2], %s204
        %p206 = pneg %p57
        %p207 = pneg %p54
        %s208 = sand.u32 %s72, 1
        %s209 = scalar_lea.sflag [#allocation6], %s208
        %s210 = sand.u32 %s72, 1
        %s211 = smul.addr %s210, 32
        %s212 = scalar_lea.vmem [#allocation5], %s211
        %p213 = pneg %p85
        %p214 = pneg %p82
        %p215 = pneg %p113
        %p216 = pneg %p110
        %s217 = sand.u32 %s100, 1
        %s218 = scalar_lea.sflag [#allocation4], %s217
        %s219 = sand.u32 %s100, 1
        %s220 = smul.addr %s219, 8
        %s221 = scalar_lea.vmem [#allocation7], %s220
        %v222 = vld [vmem:[%s187] sm:$0xff]
        %v223 = vld [vmem:[%s187 + $0x8] sm:$0xff]
        %v224 = vld [vmem:[%s187 + $0x10] sm:$0xff]
        %v225 = vld [vmem:[%s187 + $0x18] sm:$0xff]
        %v226 = vld [vmem:[%s196] sm:$0xff]
        %v227 = vld [vmem:[%s196 + $0x8] sm:$0xff]
        %v228 = vld [vmem:[%s196 + $0x10] sm:$0xff]
        %v229 = vld [vmem:[%s196 + $0x18] sm:$0xff]
        %v230 = vmax.f32 %v222, %v223
        %v231 = vmax.f32 %v224, %v225
        %v232 = vmax.f32 %v230, %v231
        %v233 = vsub.f32 %v222, %v232
        %v234 = vsub.f32 %v223, %v232
        %v235 = vsub.f32 %v224, %v232
        %v236 = vsub.f32 %v225, %v232
        %v237 = vmax.f32 %v226, %v227
        %v238 = vmax.f32 %v228, %v229
        %v239 = vmax.f32 %v237, %v238
        %v240 = vsub.f32 %v226, %v239
        %v241 = vsub.f32 %v227, %v239
        %v242 = vsub.f32 %v228, %v239
        %v243 = vsub.f32 %v229, %v239
        %v244 = vmul.f32 %v233, 1.442695
        %v245 = vpow.pop %v244
        %v246 = vmul.f32 %v234, 1.442695
        %v247 = vpow.pop %v246
        %v248 = vmul.f32 %v235, 1.442695
        %v249 = vpow.pop %v248
        %v250 = vmul.f32 %v236, 1.442695
        %v251 = vpow.pop %v250
        %v252 = vmul.f32 %v240, 1.442695
        %v253 = vpow.pop %v252
        %v254 = vmul.f32 %v241, 1.442695
        %v255 = vpow.pop %v254
        %v256 = vmul.f32 %v242, 1.442695
        %v257 = vpow.pop %v256
        %v258 = vmul.f32 %v243, 1.442695
        %v259 = vpow.pop %v258
        %v260 = vadd.f32 %v245, %v247
        %v261 = vadd.f32 %v260, %v249
        %v262 = vadd.f32 %v261, %v251
        %v263 = vadd.f32 %v253, %v255
        %v264 = vadd.f32 %v263, %v257
        %v265 = vadd.f32 %v264, %v259
        %v266 = vrcp.pop %v265
        %v267 = vmul.f32 1.0, %v266
        %v268 = vmul.f32 %v253, %v267
        %v269 = vmul.f32 %v255, %v267
        %v270 = vmul.f32 %v257, %v267
        %v271 = vmul.f32 %v259, %v267
        %v272 = vsub.f32 %v240, %v233
        %v273 = vsub.f32 %v241, %v234
        %v274 = vsub.f32 %v242, %v235
        %v275 = vsub.f32 %v243, %v236
        %v276 = vmul.f32 %v262, %v267
        %v277 = vlog2.pop %v276
        %v278 = vmul.f32 %v277, 0.6931472
        %v279 = vadd.f32 %v272, %v278
        %v280 = vadd.f32 %v273, %v278
        %v281 = vadd.f32 %v274, %v278
        %v282 = vadd.f32 %v275, %v278
        %vm283 = vcmp.gt.f32.partialorder %v268, 0.0
        %vm284 = vcmp.gt.f32.partialorder %v269, 0.0
        %vm285 = vcmp.gt.f32.partialorder %v270, 0.0
        %vm286 = vcmp.gt.f32.partialorder %v271, 0.0
        %v287 = vmul.f32 %v268, %v279
        %v288 = vmul.f32 %v269, %v280
        %v289 = vmul.f32 %v270, %v281
        %v290 = vmul.f32 %v271, %v282
        %v291 = vsel %vm283, %v287, 0.0
        %v292 = vsel %vm284, %v288, 0.0
        %v293 = vsel %vm285, %v289, 0.0
        %v294 = vsel %vm286, %v290, 0.0
        %v295 = vadd.f32 %v291, %v292
        %v296 = vadd.f32 %v295, %v293
        %v297 = vadd.f32 %v296, %v294
        %v298 = vadd.f32 %v297, 0.0
        %299 = vst [vmem:[%s221] sm:$0xff] %v298
        %s300 = sand.u32 %s100, 1
        %s301 = scalar_lea.sflag [#allocation4], %s300
        %s302 = sand.u32 %s100, 1
        %s303 = smul.addr %s302, 8
        %s304 = scalar_lea.vmem [#allocation7], %s303
        // Predicated region
        $region37: #{tpu_custom_call.1} parent=27 // pred_check
          %p305 = pneg %p110
        $region38: #{tpu_custom_call.1} parent=27 // pred_check_branch
          %307 = sbr.rel (%p305) target = $region40
        $region39: #{tpu_custom_call.1} parent=27 // pred_region
          %s309 = ssub.s32 128, 128
          %310 = vsyncadd %s301, %s309
          %s311 = sadd.s32 %s27, %s26
          %s312 = smul.addr %s311, 128
          %s313 = scalar_lea.hbm %s2, %s312
          %s315 = sshll.u32 %s304, 4
          %s316 = int_to_ptr.vmem [resolvable:$true] %s315
          %318 = dma.vmem_to_hbm [thread:$0]  %s316, 128, %s313, %s301
        $region40: #{tpu_custom_call.1} parent=27 // pred_fallthru
          _
      $region28: #{tpu_custom_call.1} parent=5 // pred_fallthru
        _
      %p319 = scmp.le.s32.totalorder 2, %s17
      // Predicated region
      $region41: #{tpu_custom_call.1} parent=5 // pred_check
        %p320 = pneg %p319
      $region42: #{tpu_custom_call.1} parent=5 // pred_check_branch
        %322 = sbr.rel (%p320) target = $region44
      $region43: #{tpu_custom_call.1} parent=5 // pred_region
        %s323 = ssub.s32 %s17, 2
        // Predicated region
        $region45: #{tpu_custom_call.1} parent=43 // pred_check
          %p324 = pneg %p116
        $region46: #{tpu_custom_call.1} parent=43 // pred_check_branch
          %326 = sbr.rel (%p324) target = $region48
        $region47: #{tpu_custom_call.1} parent=43 // pred_region
          %s327 = sand.u32 %s101, 1
          %s328 = scalar_lea.sflag [#allocation4], %s327
          %s329 = sand.u32 %s101, 1
          %s330 = smul.addr %s329, 8
          %s331 = scalar_lea.vmem [#allocation7], %s330
          %332 = dma.done %s328, 128
        $region48: #{tpu_custom_call.1} parent=43 // pred_fallthru
          _
      $region44: #{tpu_custom_call.1} parent=5 // pred_fallthru
        _
    $region6: #{tpu_custom_call.1} parent=1 // loop_footer
      %s21 = sadd.s32 1, %s17
    $region7: #{tpu_custom_call.1} parent=1 // loop_footer_branch
      %16 = sbr.rel target = $region3
    $region8: #{tpu_custom_call.1} parent=1 // loop_exit
      _
    %333 = vsyncpa [#allocation3], 1
    %s334 = scalar_lea.sflag [#allocation3], 1
    %335 = vsyncpa %s334, 1
    %336 = vsyncpa [#allocation6], 1
    %s337 = scalar_lea.sflag [#allocation6], 1
    %338 = vsyncpa %s337, 1
    %339 = vsyncpa [#allocation4], 1
    %s340 = scalar_lea.sflag [#allocation4], 1
    %341 = vsyncpa %s340, 1

</llo_original>
